<compile_context>
chip_gen: v5e
topology: v5e:2x2
jax: 0.10.0
libtpu: 0.0.40
codegen_flags: <defaults>
</compile_context>

<pallas_src>
import functools

import jax
import jax.numpy as jnp
from jax.experimental import pallas as pl
from jax.experimental.pallas import tpu as pltpu


def _round_up(x, m):
    return (x + m - 1) // m * m


def _game_network_kernel(x_ref,
                         w1_ref, b1_ref,
                         w2_ref, b2_ref,
                         wh_ref, bh_ref,
                         out_ref,
                         *, n_actions):
    """One batch tile of the full forward pass.

    out_ref columns: [0, n_actions)  -> softmax policy
                     n_actions       -> tanh value
                     > n_actions     -> zero padding
    """
    x = x_ref[...]
    mm_dtype = x.dtype

    # fc1 + relu (MXU matmul, f32 accumulation; biases / elementwise in f32).
    h1 = jnp.dot(x, w1_ref[...], preferred_element_type=jnp.float32) + b1_ref[...]
    h1 = jnp.maximum(h1, 0.0)

    # fc2 + relu.
    h2 = jnp.dot(h1.astype(mm_dtype), w2_ref[...],
                 preferred_element_type=jnp.float32) + b2_ref[...]
    h2 = jnp.maximum(h2, 0.0)

    # Fused policy+value heads: a single (TB, H) @ (H, HEADS_PAD) matmul.
    heads = jnp.dot(h2.astype(mm_dtype), wh_ref[...],
                    preferred_element_type=jnp.float32) + bh_ref[...]

    lane = jax.lax.broadcasted_iota(jnp.int32, heads.shape, dimension=1)
    is_policy = lane < n_actions
    is_value = lane == n_actions

    # Numerically-stable softmax over the real action lanes only; padded
    # lanes (and the value lane) are pushed to -inf so they contribute 0.
    logits = jnp.where(is_policy, heads, -jnp.inf)
    logits = logits - jnp.max(logits, axis=-1, keepdims=True)
    e = jnp.exp(logits)                              # exp(-inf) == 0 on padding
    denom = jnp.sum(e, axis=-1, keepdims=True)
    r = pl.reciprocal(denom, approx=True)            # EUP vrcp (otherwise idle)
    r = r * (2.0 - denom * r)                        # one Newton step -> f32 acc.
    policy = e * r

    value = jnp.tanh(heads)                          # only column n_actions used

    out_ref[...] = jnp.where(is_policy, policy,
                             jnp.where(is_value, value, 0.0))


def game_network_forward(x, params, *, return_policy=True, batch_tile=128,
                         matmul_dtype=jnp.float32):
    """Full GameNetwork forward pass in one Pallas call.

    Returns (policy, value) like the PyTorch module with return_policy=True,
    otherwise just value.  `matmul_dtype=jnp.bfloat16` enables the v6e/v7x
    MXU fast path (accumulation and elementwise math stay f32).
    """
    B, input_size = x.shape
    hidden = params["w1"].shape[1]
    n_actions = params["wp"].shape[1]

    # ---- pad everything to TPU tile granularity ----------------------------
    TB = min(int(batch_tile), _round_up(max(B, 1), 8))
    TB = _round_up(TB, 8)
    B_pad = _round_up(max(B, 1), TB)
    IN_P = _round_up(input_size, 128)
    H_P = _round_up(hidden, 128)
    HD_P = _round_up(n_actions + 1, 128)      # policy lanes + 1 value lane

    f32 = jnp.float32
    x_p = jnp.zeros((B_pad, IN_P), f32).at[:B, :input_size].set(x.astype(f32))
    w1 = jnp.zeros((IN_P, H_P), f32).at[:input_size, :hidden].set(params["w1"])
    b1 = jnp.zeros((1, H_P), f32).at[:, :hidden].set(params["b1"].reshape(1, -1))
    w2 = jnp.zeros((H_P, H_P), f32).at[:hidden, :hidden].set(params["w2"])
    b2 = jnp.zeros((1, H_P), f32).at[:, :hidden].set(params["b2"].reshape(1, -1))
    # Fused head weights: [ policy | value | zero padding ].
    wh = jnp.zeros((H_P, HD_P), f32)
    wh = wh.at[:hidden, :n_actions].set(params["wp"])
    wh = wh.at[:hidden, n_actions:n_actions + 1].set(params["wv"])
    bh = jnp.zeros((1, HD_P), f32)
    bh = bh.at[:, :n_actions].set(params["bp"].reshape(1, -1))
    bh = bh.at[:, n_actions:n_actions + 1].set(params["bv"].reshape(1, -1))

    # bf16 MXU operands on v6e/v7x; biases stay f32 (elementwise path is f32).
    x_p = x_p.astype(matmul_dtype)
    w1 = w1.astype(matmul_dtype)
    w2 = w2.astype(matmul_dtype)
    wh = wh.astype(matmul_dtype)

    grid = (B_pad // TB,)
    mm_bytes = jnp.dtype(matmul_dtype).itemsize
    # Rough VMEM budget: double-buffered x/out tiles + resident weights +
    # live f32 intermediates.  Explicit so v7x (64 MiB physical) never
    # overshoots; clamped to the universally-safe [16, 32] MiB window.
    est_bytes = (2 * TB * (IN_P * mm_bytes + HD_P * 4)
                 + 2 * (IN_P * H_P + H_P * H_P + H_P * HD_P) * mm_bytes
                 + 2 * (2 * H_P + HD_P) * 4
                 + 4 * TB * (2 * H_P + 4 * HD_P))
    vmem_limit = int(min(max(2 * est_bytes, 16 << 20), 32 << 20))

    kernel = functools.partial(_game_network_kernel, n_actions=n_actions)
    out = pl.pallas_call(
        kernel,
        out_shape=jax.ShapeDtypeStruct((B_pad, HD_P), jnp.float32),
        grid=grid,
        in_specs=[
            pl.BlockSpec((TB, IN_P), lambda i: (i, 0)),    # x: streamed per tile
            pl.BlockSpec((IN_P, H_P), lambda i: (0, 0)),   # weights: VMEM-resident
            pl.BlockSpec((1, H_P), lambda i: (0, 0)),
            pl.BlockSpec((H_P, H_P), lambda i: (0, 0)),
            pl.BlockSpec((1, H_P), lambda i: (0, 0)),
            pl.BlockSpec((H_P, HD_P), lambda i: (0, 0)),
            pl.BlockSpec((1, HD_P), lambda i: (0, 0)),
        ],
        out_specs=pl.BlockSpec((TB, HD_P), lambda i: (i, 0)),
        compiler_params=pltpu.CompilerParams(
            dimension_semantics=("parallel",),
            vmem_limit_bytes=vmem_limit,
        ),
    )(x_p, w1, b1, w2, b2, wh, bh)

    policy = out[:B, :n_actions]
    value = out[:B, n_actions:n_actions + 1]
    if return_policy:
        return policy, value
    return value


def init_params(key, input_size, action_size, hidden_size=256):
    """Deterministic synthetic init matching nn.Linear shapes.

    PyTorch stores Linear weight as (out, in); here we keep (in, out) since
    the kernel computes x @ W.  Values use U(-1/sqrt(fan_in), 1/sqrt(fan_in)),
    like PyTorch's default Linear init.
    """
    def linear(k, fan_in, fan_out):
        kw, kb = jax.random.split(k)
        bound = 1.0 / jnp.sqrt(fan_in)
        w = jax.random.uniform(kw, (fan_in, fan_out), jnp.float32, -bound, bound)
        b = jax.random.uniform(kb, (1, fan_out), jnp.float32, -bound, bound)
        return w, b

    k1, k2, k3, k4 = jax.random.split(key, 4)
    w1, b1 = linear(k1, input_size, hidden_size)
    w2, b2 = linear(k2, hidden_size, hidden_size)
    wp, bp = linear(k3, hidden_size, action_size)
    wv, bv = linear(k4, hidden_size, 1)
    return {"w1": w1, "b1": b1, "w2": w2, "b2": b2,
            "wp": wp, "bp": bp, "wv": wv, "bv": bv}


def _reference_forward(x, p):
    h1 = jnp.maximum(x @ p["w1"] + p["b1"], 0.0)
    h2 = jnp.maximum(h1 @ p["w2"] + p["b2"], 0.0)
    value = jnp.tanh(h2 @ p["wv"] + p["bv"])
    policy = jax.nn.softmax(h2 @ p["wp"] + p["bp"], axis=-1)
    return policy, value


# TODO(synk): predict()/save_model()/load_model() are host-side torch I/O
# helpers with no kernel equivalent; only forward() is implemented here.

if __name__ == "__main__":
    key = jax.random.PRNGKey(0)
    k_x, k_p = jax.random.split(key)

    batch = 2
    input_size = 16     # e.g. flattened Snort board encoding
    action_size = 8
    hidden_size = 32

    x = jax.random.normal(k_x, (batch, input_size), jnp.float32)
    params = init_params(k_p, input_size, action_size, hidden_size)

    ref_policy, ref_value = _reference_forward(x, params)

    # f32 MXU operands: matches the pure-JAX reference to tight tolerance.
    policy, value = game_network_forward(x, params)
    jax.block_until_ready((policy, value))
    assert policy.shape == (batch, action_size)
    assert value.shape == (batch, 1)
    assert jnp.allclose(policy, ref_policy, atol=1e-5, rtol=1e-5)
    assert jnp.allclose(value, ref_value, atol=1e-5, rtol=1e-5)
    assert jnp.allclose(jnp.sum(policy, axis=-1), 1.0, atol=1e-5)

    # bf16 MXU operands (v6e / v7x fast path); accumulation stays f32.
    policy_bf16, value_bf16 = game_network_forward(
        x, params, matmul_dtype=jnp.bfloat16)
    jax.block_until_ready((policy_bf16, value_bf16))
    assert policy_bf16.shape == (batch, action_size)
    assert value_bf16.shape == (batch, 1)
    assert jnp.allclose(policy_bf16, ref_policy, atol=5e-2)
    assert jnp.allclose(value_bf16, ref_value, atol=5e-2)
    assert jnp.allclose(jnp.sum(policy_bf16, axis=-1), 1.0, atol=1e-3)

    # value-only path, mirroring forward(..., return_policy=False).
    v_only = game_network_forward(x, params, return_policy=False)
    jax.block_until_ready(v_only)
    assert jnp.allclose(v_only, ref_value, atol=1e-5, rtol=1e-5)

    print("KERNEL_OK")
</pallas_src>

<mosaic_0001>
module attributes {stable_mosaic.version = 11 : i64} {
  func.func @_game_network_kernel(%arg0: i32, %arg1: memref<8x128xf32, #tpu.memory_space<vmem>>, %arg2: memref<128x128xf32, #tpu.memory_space<vmem>>, %arg3: memref<1x128xf32, #tpu.memory_space<vmem>>, %arg4: memref<128x128xf32, #tpu.memory_space<vmem>>, %arg5: memref<1x128xf32, #tpu.memory_space<vmem>>, %arg6: memref<128x128xf32, #tpu.memory_space<vmem>>, %arg7: memref<1x128xf32, #tpu.memory_space<vmem>>, %arg8: memref<8x128xf32, #tpu.memory_space<vmem>>) attributes {dimension_semantics = [#tpu.dimension_semantics<parallel>], iteration_bounds = array<i64: 1>, scalar_prefetch = 0 : i64, scratch_operands = 0 : i64, tpu.core_type = #tpu.core_type<tc>, window_params = [{transform_indices = @transform_0, window_bounds = array<i64: 8, 128>}, {pipeline_mode = #tpu.pipeline_mode<synchronous>, transform_indices = @transform_1, window_bounds = array<i64: 128, 128>}, {pipeline_mode = #tpu.pipeline_mode<synchronous>, transform_indices = @transform_2, window_bounds = array<i64: 1, 128>}, {pipeline_mode = #tpu.pipeline_mode<synchronous>, transform_indices = @transform_3, window_bounds = array<i64: 128, 128>}, {pipeline_mode = #tpu.pipeline_mode<synchronous>, transform_indices = @transform_4, window_bounds = array<i64: 1, 128>}, {pipeline_mode = #tpu.pipeline_mode<synchronous>, transform_indices = @transform_5, window_bounds = array<i64: 128, 128>}, {pipeline_mode = #tpu.pipeline_mode<synchronous>, transform_indices = @transform_6, window_bounds = array<i64: 1, 128>}, {transform_indices = @transform_7, window_bounds = array<i64: 8, 128>}]} {
    %c0 = arith.constant 0 : index
    %c0_0 = arith.constant 0 : index
    %0 = vector.load %arg1[%c0, %c0_0] : memref<8x128xf32, #tpu.memory_space<vmem>>, vector<8x128xf32>
    %c0_1 = arith.constant 0 : index
    %c0_2 = arith.constant 0 : index
    %1 = vector.load %arg2[%c0_1, %c0_2] : memref<128x128xf32, #tpu.memory_space<vmem>>, vector<128x128xf32>
    %cst = arith.constant dense<0.000000e+00> : vector<8x128xf32>
    %2 = tpu.matmul %0, %1, %cst {dimension_numbers = #tpu.dot_dimension_numbers<[1], [0], [0], [1], [0, 0, 1, 1], [], []>} : vector<8x128xf32>, vector<128x128xf32>, vector<8x128xf32> -> vector<8x128xf32>
    %c0_3 = arith.constant 0 : index
    %c0_4 = arith.constant 0 : index
    %3 = vector.load %arg3[%c0_3, %c0_4] : memref<1x128xf32, #tpu.memory_space<vmem>>, vector<1x128xf32>
    %4 = vector.broadcast %3 : vector<1x128xf32> to vector<8x128xf32>
    %5 = arith.addf %2, %4 : vector<8x128xf32>
    %cst_5 = arith.constant 0.000000e+00 : f32
    %6 = vector.broadcast %cst_5 : f32 to vector<8x128xf32>
    %7 = arith.maximumf %5, %6 : vector<8x128xf32>
    %c0_6 = arith.constant 0 : index
    %c0_7 = arith.constant 0 : index
    %8 = vector.load %arg4[%c0_6, %c0_7] : memref<128x128xf32, #tpu.memory_space<vmem>>, vector<128x128xf32>
    %cst_8 = arith.constant dense<0.000000e+00> : vector<8x128xf32>
    %9 = tpu.matmul %7, %8, %cst_8 {dimension_numbers = #tpu.dot_dimension_numbers<[1], [0], [0], [1], [0, 0, 1, 1], [], []>} : vector<8x128xf32>, vector<128x128xf32>, vector<8x128xf32> -> vector<8x128xf32>
    %c0_9 = arith.constant 0 : index
    %c0_10 = arith.constant 0 : index
    %10 = vector.load %arg5[%c0_9, %c0_10] : memref<1x128xf32, #tpu.memory_space<vmem>>, vector<1x128xf32>
    %11 = vector.broadcast %10 : vector<1x128xf32> to vector<8x128xf32>
    %12 = arith.addf %9, %11 : vector<8x128xf32>
    %cst_11 = arith.constant 0.000000e+00 : f32
    %13 = vector.broadcast %cst_11 : f32 to vector<8x128xf32>
    %14 = arith.maximumf %12, %13 : vector<8x128xf32>
    %c0_12 = arith.constant 0 : index
    %c0_13 = arith.constant 0 : index
    %15 = vector.load %arg6[%c0_12, %c0_13] : memref<128x128xf32, #tpu.memory_space<vmem>>, vector<128x128xf32>
    %cst_14 = arith.constant dense<0.000000e+00> : vector<8x128xf32>
    %16 = tpu.matmul %14, %15, %cst_14 {dimension_numbers = #tpu.dot_dimension_numbers<[1], [0], [0], [1], [0, 0, 1, 1], [], []>} : vector<8x128xf32>, vector<128x128xf32>, vector<8x128xf32> -> vector<8x128xf32>
    %c0_15 = arith.constant 0 : index
    %c0_16 = arith.constant 0 : index
    %17 = vector.load %arg7[%c0_15, %c0_16] : memref<1x128xf32, #tpu.memory_space<vmem>>, vector<1x128xf32>
    %18 = vector.broadcast %17 : vector<1x128xf32> to vector<8x128xf32>
    %19 = arith.addf %16, %18 : vector<8x128xf32>
    %20 = tpu.iota {dimensions = array<i32: 1>} : vector<8x128xi32>
    %c8_i32 = arith.constant 8 : i32
    %21 = vector.broadcast %c8_i32 : i32 to vector<8x128xi32>
    %22 = arith.cmpi slt, %20, %21 : vector<8x128xi32>
    %c8_i32_17 = arith.constant 8 : i32
    %23 = vector.broadcast %c8_i32_17 : i32 to vector<8x128xi32>
    %24 = arith.cmpi eq, %20, %23 : vector<8x128xi32>
    %cst_18 = arith.constant 0xFF800000 : f32
    %25 = vector.broadcast %cst_18 : f32 to vector<8x128xf32>
    %26 = arith.select %22, %19, %25 : vector<8x128xi1>, vector<8x128xf32>
    %cst_19 = arith.constant dense<0xFF800000> : vector<8xf32>
    %27 = vector.multi_reduction <maximumf>, %26, %cst_19 [1] : vector<8x128xf32> to vector<8xf32>
    %28 = vector.shape_cast %27 : vector<8xf32> to vector<8x1xf32>
    %29 = vector.broadcast %28 : vector<8x1xf32> to vector<8x128xf32>
    %30 = arith.subf %26, %29 : vector<8x128xf32>
    %31 = math.exp %30 : vector<8x128xf32>
    %cst_20 = arith.constant dense<0.000000e+00> : vector<8xf32>
    %32 = vector.multi_reduction <add>, %31, %cst_20 [1] : vector<8x128xf32> to vector<8xf32>
    %33 = vector.shape_cast %32 : vector<8xf32> to vector<8x1xf32>
    %34 = tpu.reciprocal %33 {approx = true} : vector<8x1xf32> -> vector<8x1xf32>
    %35 = arith.mulf %33, %34 : vector<8x1xf32>
    %cst_21 = arith.constant 2.000000e+00 : f32
    %36 = vector.broadcast %cst_21 : f32 to vector<8x1xf32>
    %37 = arith.subf %36, %35 : vector<8x1xf32>
    %38 = arith.mulf %34, %37 : vector<8x1xf32>
    %39 = vector.broadcast %38 : vector<8x1xf32> to vector<8x128xf32>
    %40 = arith.mulf %31, %39 : vector<8x128xf32>
    %41 = math.tanh %19 : vector<8x128xf32>
    %cst_22 = arith.constant 0.000000e+00 : f32
    %42 = vector.broadcast %cst_22 : f32 to vector<8x128xf32>
    %43 = arith.select %24, %41, %42 : vector<8x128xi1>, vector<8x128xf32>
    %44 = arith.select %22, %40, %43 : vector<8x128xi1>, vector<8x128xf32>
    %c0_23 = arith.constant 0 : index
    %c0_24 = arith.constant 0 : index
    %45 = vector.load %arg8[%c0_23, %c0_24] : memref<8x128xf32, #tpu.memory_space<vmem>>, vector<8x128xf32>
    tpu.vector_store %arg8[%c0_23, %c0_24], %44 {strides = array<i32>} : memref<8x128xf32, #tpu.memory_space<vmem>>, vector<8x128xf32>,
    return
  }
  func.func @transform_0(%arg0: i32) -> (i32, i32) {
    %c0_i32 = arith.constant 0 : i32
    %c0_i32_0 = arith.constant 0 : i32
    return %arg0, %c0_i32 : i32, i32
  }
  func.func @transform_1(%arg0: i32) -> (i32, i32) {
    %c0_i32 = arith.constant 0 : i32
    %c0_i32_0 = arith.constant 0 : i32
    %c0_i32_1 = arith.constant 0 : i32
    return %c0_i32, %c0_i32_0 : i32, i32
  }
  func.func @transform_2(%arg0: i32) -> (i32, i32) {
    %c0_i32 = arith.constant 0 : i32
    %c0_i32_0 = arith.constant 0 : i32
    %c0_i32_1 = arith.constant 0 : i32
    return %c0_i32, %c0_i32_0 : i32, i32
  }
  func.func @transform_3(%arg0: i32) -> (i32, i32) {
    %c0_i32 = arith.constant 0 : i32
    %c0_i32_0 = arith.constant 0 : i32
    %c0_i32_1 = arith.constant 0 : i32
    return %c0_i32, %c0_i32_0 : i32, i32
  }
  func.func @transform_4(%arg0: i32) -> (i32, i32) {
    %c0_i32 = arith.constant 0 : i32
    %c0_i32_0 = arith.constant 0 : i32
    %c0_i32_1 = arith.constant 0 : i32
    return %c0_i32, %c0_i32_0 : i32, i32
  }
  func.func @transform_5(%arg0: i32) -> (i32, i32) {
    %c0_i32 = arith.constant 0 : i32
    %c0_i32_0 = arith.constant 0 : i32
    %c0_i32_1 = arith.constant 0 : i32
    return %c0_i32, %c0_i32_0 : i32, i32
  }
  func.func @transform_6(%arg0: i32) -> (i32, i32) {
    %c0_i32 = arith.constant 0 : i32
    %c0_i32_0 = arith.constant 0 : i32
    %c0_i32_1 = arith.constant 0 : i32
    return %c0_i32, %c0_i32_0 : i32, i32
  }
  func.func @transform_7(%arg0: i32) -> (i32, i32) {
    %c0_i32 = arith.constant 0 : i32
    %c0_i32_0 = arith.constant 0 : i32
    return %arg0, %c0_i32 : i32, i32
  }
}

</mosaic_0001>

<llo_original>
// kernel: tpu_custom_call.1
$region0: #{tpu_custom_call.1}
  #allocation0 [shape = 'u32[]', space=smem, size = 0x4, offset = 0x4, fixed_abs, tag = 'smem constant byte address 0x4 - core index']
  #allocation1 [shape = 'u32[72,128]{1,0:T(1,128)}', space=vmem, size = 0x9000, scoped, tag = 'internal scratch']
  %s0 = inlined_call_operand.hbm [shape: f32[8,128], index: 0, kind: input, shape index: {}]
  %s1 = inlined_call_operand.hbm [shape: f32[128,128], index: 1, kind: input, shape index: {}]
  %s2 = inlined_call_operand.vmem [shape: f32[1,128], index: 2, kind: input, shape index: {}]
  %s3 = inlined_call_operand.hbm [shape: f32[128,128], index: 3, kind: input, shape index: {}]
  %s4 = inlined_call_operand.vmem [shape: f32[1,128], index: 4, kind: input, shape index: {}]
  %s5 = inlined_call_operand.hbm [shape: f32[128,128], index: 5, kind: input, shape index: {}]
  %s6 = inlined_call_operand.vmem [shape: f32[1,128], index: 6, kind: input, shape index: {}]
  %s7 = inlined_call_operand.hbm [shape: f32[8,128], index: 7, kind: output, shape index: {}]
  %s8 = sld [smem:[#allocation0]]
  $region54: #{tpu_custom_call.1} parent=0
    _
  %s10 = ssub.s32 1, %s8
  %s11 = scalar_select 0, %s10, %s8
  $region1: #{tpu_custom_call.1} parent=0
    #allocation2 [shape = 'u8[4096]{0}', space=vmem, size = 0x1000, scoped, tag = 'input window, operand 0, single buffered']
    #allocation3 [shape = 's32[1]{0}', space=sflag, size = 0x4, scoped, tag = 'scoped memory for tpu_custom_call.1']
    #allocation4 [shape = 's32[1]{0}', space=sflag, size = 0x4, scoped, tag = 'scoped memory for tpu_custom_call.1']
    #allocation5 [shape = 'u8[65536]{0}', space=vmem, size = 0x10000, scoped, tag = 'input window, operand 1, single buffered']
    #allocation6 [shape = 's32[1]{0}', space=sflag, size = 0x4, scoped, tag = 'scoped memory for tpu_custom_call.1']
    #allocation7 [shape = 'u8[65536]{0}', space=vmem, size = 0x10000, scoped, tag = 'input window, operand 3, single buffered']
    #allocation8 [shape = 'u8[65536]{0}', space=vmem, size = 0x10000, scoped, tag = 'input window, operand 5, single buffered']
    #allocation9 [shape = 's32[1]{0}', space=sflag, size = 0x4, scoped, tag = 'scoped memory for tpu_custom_call.1']
    #allocation10 [shape = 'u8[4096]{0}', space=vmem, size = 0x1000, scoped, tag = 'output window, operand 0, single buffered']
    %12 = vsyncpa [#allocation3], 0
    %13 = vsyncpa [#allocation6], 0
    %14 = vsyncpa [#allocation9], 0
    %15 = vsyncpa [#allocation4], 0
    // Predicated region
    $region2: #{tpu_custom_call.1} parent=1 // pred_check
      _
    $region3: #{tpu_custom_call.1} parent=1 // pred_check_branch
      %17 = sbr.rel (0) target = $region5
    $region4: #{tpu_custom_call.1} parent=1 // pred_region
      %19 = vsyncadd [#allocation3], 0
      %s21 = sshll.u32 %s0, 4
      %s22 = int_to_ptr.hbm [resolvable:$true] %s21
      %s23 = sshll.u32 [#allocation2], 4
      %s24 = int_to_ptr.vmem [resolvable:$true] %s23
      %26 = dma.hbm_to_vmem [thread:$0]  %s22, 128, %s24, [#allocation3]
    $region5: #{tpu_custom_call.1} parent=1 // pred_fallthru
      _
    // Predicated region
    $region6: #{tpu_custom_call.1} parent=1 // pred_check
      _
    $region7: #{tpu_custom_call.1} parent=1 // pred_check_branch
      %28 = sbr.rel (0) target = $region9
    $region8: #{tpu_custom_call.1} parent=1 // pred_region
      %30 = vsyncadd [#allocation6], 0
      %s31 = sshll.u32 %s1, 4
      %s32 = int_to_ptr.hbm [resolvable:$true] %s31
      %s33 = sshll.u32 [#allocation5], 4
      %s34 = int_to_ptr.vmem [resolvable:$true] %s33
      %39 = dma.hbm_to_vmem [thread:$0]  %s32, 2048, %s34, [#allocation6], 128, 128, 8
    $region9: #{tpu_custom_call.1} parent=1 // pred_fallthru
      _
    // Predicated region
    $region10: #{tpu_custom_call.1} parent=1 // pred_check
      _
    $region11: #{tpu_custom_call.1} parent=1 // pred_check_branch
      %41 = sbr.rel (0) target = $region13
    $region12: #{tpu_custom_call.1} parent=1 // pred_region
      _
    $region13: #{tpu_custom_call.1} parent=1 // pred_fallthru
      _
    // Predicated region
    $region14: #{tpu_custom_call.1} parent=1 // pred_check
      _
    $region15: #{tpu_custom_call.1} parent=1 // pred_check_branch
      %43 = sbr.rel (0) target = $region17
    $region16: #{tpu_custom_call.1} parent=1 // pred_region
      %45 = vsyncadd [#allocation6], 0
      %s46 = sshll.u32 %s3, 4
      %s47 = int_to_ptr.hbm [resolvable:$true] %s46
      %s48 = sshll.u32 [#allocation7], 4
      %s49 = int_to_ptr.vmem [resolvable:$true] %s48
      %54 = dma.hbm_to_vmem [thread:$0]  %s47, 2048, %s49, [#allocation6], 128, 128, 8
    $region17: #{tpu_custom_call.1} parent=1 // pred_fallthru
      _
    // Predicated region
    $region18: #{tpu_custom_call.1} parent=1 // pred_check
      _
    $region19: #{tpu_custom_call.1} parent=1 // pred_check_branch
      %56 = sbr.rel (0) target = $region21
    $region20: #{tpu_custom_call.1} parent=1 // pred_region
      _
    $region21: #{tpu_custom_call.1} parent=1 // pred_fallthru
      _
    // Predicated region
    $region22: #{tpu_custom_call.1} parent=1 // pred_check
      _
    $region23: #{tpu_custom_call.1} parent=1 // pred_check_branch
      %58 = sbr.rel (0) target = $region25
    $region24: #{tpu_custom_call.1} parent=1 // pred_region
      %60 = vsyncadd [#allocation9], 0
      %s61 = sshll.u32 %s5, 4
      %s62 = int_to_ptr.hbm [resolvable:$true] %s61
      %s63 = sshll.u32 [#allocation8], 4
      %s64 = int_to_ptr.vmem [resolvable:$true] %s63
      %69 = dma.hbm_to_vmem [thread:$0]  %s62, 2048, %s64, [#allocation9], 128, 128, 8
    $region25: #{tpu_custom_call.1} parent=1 // pred_fallthru
      _
    // Predicated region
    $region26: #{tpu_custom_call.1} parent=1 // pred_check
      _
    $region27: #{tpu_custom_call.1} parent=1 // pred_check_branch
      %71 = sbr.rel (0) target = $region29
    $region28: #{tpu_custom_call.1} parent=1 // pred_region
      _
    $region29: #{tpu_custom_call.1} parent=1 // pred_fallthru
      _
    // Predicated region
    $region30: #{tpu_custom_call.1} parent=1 // pred_check
      _
    $region31: #{tpu_custom_call.1} parent=1 // pred_check_branch
      %73 = sbr.rel (0) target = $region33
    $region32: #{tpu_custom_call.1} parent=1 // pred_region
      %75 = dma.done [#allocation3], 128
    $region33: #{tpu_custom_call.1} parent=1 // pred_fallthru
      _
    // Predicated region
    $region34: #{tpu_custom_call.1} parent=1 // pred_check
      _
    $region35: #{tpu_custom_call.1} parent=1 // pred_check_branch
      %77 = sbr.rel (0) target = $region37
    $region36: #{tpu_custom_call.1} parent=1 // pred_region
      %79 = dma.done [#allocation6], 2048
    $region37: #{tpu_custom_call.1} parent=1 // pred_fallthru
      _
    // Predicated region
    $region38: #{tpu_custom_call.1} parent=1 // pred_check
      _
    $region39: #{tpu_custom_call.1} parent=1 // pred_check_branch
      %81 = sbr.rel (0) target = $region41
    $region40: #{tpu_custom_call.1} parent=1 // pred_region
      %83 = dma.done [#allocation6], 2048
    $region41: #{tpu_custom_call.1} parent=1 // pred_fallthru
      _
    // Predicated region
    $region42: #{tpu_custom_call.1} parent=1 // pred_check
      _
    $region43: #{tpu_custom_call.1} parent=1 // pred_check_branch
      %85 = sbr.rel (0) target = $region45
    $region44: #{tpu_custom_call.1} parent=1 // pred_region
      %87 = dma.done [#allocation9], 2048
    $region45: #{tpu_custom_call.1} parent=1 // pred_fallthru
      _
    %v88 = vld [vmem:[#allocation2] sm:$0xff]
    %v89 = vld [vmem:[#allocation5] sm:$0xff]
    %v90 = vld [vmem:[#allocation5 + $0x8] sm:$0xff]
    %v91 = vld [vmem:[#allocation5 + $0x10] sm:$0xff]
    %v92 = vld [vmem:[#allocation5 + $0x18] sm:$0xff]
    %v93 = vld [vmem:[#allocation5 + $0x20] sm:$0xff]
    %v94 = vld [vmem:[#allocation5 + $0x28] sm:$0xff]
    %v95 = vld [vmem:[#allocation5 + $0x30] sm:$0xff]
    %v96 = vld [vmem:[#allocation5 + $0x38] sm:$0xff]
    %v97 = vld [vmem:[#allocation5 + $0x40] sm:$0xff]
    %v98 = vld [vmem:[#allocation5 + $0x48] sm:$0xff]
    %v99 = vld [vmem:[#allocation5 + $0x50] sm:$0xff]
    %v100 = vld [vmem:[#allocation5 + $0x58] sm:$0xff]
    %v101 = vld [vmem:[#allocation5 + $0x60] sm:$0xff]
    %v102 = vld [vmem:[#allocation5 + $0x68] sm:$0xff]
    %v103 = vld [vmem:[#allocation5 + $0x70] sm:$0xff]
    %v104 = vld [vmem:[#allocation5 + $0x78] sm:$0xff]
    %v105 = vld [vmem:[%s2] sm:$0x1]
    %v107 = vperm.slane %v105, 0
    %109 = vmatpush.msra.mxu0 %v104
    %110 = vmatpush.msra.mxu0 %v103
    %111 = vmatpush.msra.mxu0 %v102
    %112 = vmatpush.msra.mxu0 %v101
    %113 = vmatpush.msra.mxu0 %v100
    %114 = vmatpush.msra.mxu0 %v99
    %115 = vmatpush.msra.mxu0 %v98
    %116 = vmatpush.msra.mxu0 %v97
    %117 = vmatpush.msra.mxu0 %v96
    %118 = vmatpush.msra.mxu0 %v95
    %119 = vmatpush.msra.mxu0 %v94
    %120 = vmatpush.msra.mxu0 %v93
    %121 = vmatpush.msra.mxu0 %v92
    %122 = vmatpush.msra.mxu0 %v91
    %123 = vmatpush.msra.mxu0 %v90
    %124 = vmatpush.msra.mxu0 %v89
    %125 = vmatmul.f32.gmra.mxu0 %v88
    %v126 = vpop.f32.mrf.mxu0
    %v127 = vadd.f32 %v107, %v126
    %128 = vdwg.mxu0
    %v129 = vmax.f32 %v127, 0.0
    %v130 = vld [vmem:[#allocation7] sm:$0xff]
    %v131 = vld [vmem:[#allocation7 + $0x8] sm:$0xff]
    %v132 = vld [vmem:[#allocation7 + $0x10] sm:$0xff]
    %v133 = vld [vmem:[#allocation7 + $0x18] sm:$0xff]
    %v134 = vld [vmem:[#allocation7 + $0x20] sm:$0xff]
    %v135 = vld [vmem:[#allocation7 + $0x28] sm:$0xff]
    %v136 = vld [vmem:[#allocation7 + $0x30] sm:$0xff]
    %v137 = vld [vmem:[#allocation7 + $0x38] sm:$0xff]
    %v138 = vld [vmem:[#allocation7 + $0x40] sm:$0xff]
    %v139 = vld [vmem:[#allocation7 + $0x48] sm:$0xff]
    %v140 = vld [vmem:[#allocation7 + $0x50] sm:$0xff]
    %v141 = vld [vmem:[#allocation7 + $0x58] sm:$0xff]
    %v142 = vld [vmem:[#allocation7 + $0x60] sm:$0xff]
    %v143 = vld [vmem:[#allocation7 + $0x68] sm:$0xff]
    %v144 = vld [vmem:[#allocation7 + $0x70] sm:$0xff]
    %v145 = vld [vmem:[#allocation7 + $0x78] sm:$0xff]
    %v146 = vld [vmem:[%s4] sm:$0x1]
    %v148 = vperm.slane %v146, 0
    %150 = vmatpush.msra.mxu0 %v145
    %151 = vmatpush.msra.mxu0 %v144
    %152 = vmatpush.msra.mxu0 %v143
    %153 = vmatpush.msra.mxu0 %v142
    %154 = vmatpush.msra.mxu0 %v141
    %155 = vmatpush.msra.mxu0 %v140
    %156 = vmatpush.msra.mxu0 %v139
    %157 = vmatpush.msra.mxu0 %v138
    %158 = vmatpush.msra.mxu0 %v137
    %159 = vmatpush.msra.mxu0 %v136
    %160 = vmatpush.msra.mxu0 %v135
    %161 = vmatpush.msra.mxu0 %v134
    %162 = vmatpush.msra.mxu0 %v133
    %163 = vmatpush.msra.mxu0 %v132
    %164 = vmatpush.msra.mxu0 %v131
    %165 = vmatpush.msra.mxu0 %v130
    %166 = vmatmul.f32.gmra.mxu0 %v129
    %v167 = vpop.f32.mrf.mxu0
    %v168 = vadd.f32 %v148, %v167
    %169 = vdwg.mxu0
    %v170 = vmax.f32 %v168, 0.0
    %v171 = vld [vmem:[#allocation8] sm:$0xff]
    %v172 = vld [vmem:[#allocation8 + $0x8] sm:$0xff]
    %v173 = vld [vmem:[#allocation8 + $0x10] sm:$0xff]
    %v174 = vld [vmem:[#allocation8 + $0x18] sm:$0xff]
    %v175 = vld [vmem:[#allocation8 + $0x20] sm:$0xff]
    %v176 = vld [vmem:[#allocation8 + $0x28] sm:$0xff]
    %v177 = vld [vmem:[#allocation8 + $0x30] sm:$0xff]
    %v178 = vld [vmem:[#allocation8 + $0x38] sm:$0xff]
    %v179 = vld [vmem:[#allocation8 + $0x40] sm:$0xff]
    %v180 = vld [vmem:[#allocation8 + $0x48] sm:$0xff]
    %v181 = vld [vmem:[#allocation8 + $0x50] sm:$0xff]
    %v182 = vld [vmem:[#allocation8 + $0x58] sm:$0xff]
    %v183 = vld [vmem:[#allocation8 + $0x60] sm:$0xff]
    %v184 = vld [vmem:[#allocation8 + $0x68] sm:$0xff]
    %v185 = vld [vmem:[#allocation8 + $0x70] sm:$0xff]
    %v186 = vld [vmem:[#allocation8 + $0x78] sm:$0xff]
    %v187 = vld [vmem:[%s6] sm:$0x1]
    %v189 = vperm.slane %v187, 0
    %191 = vmatpush.msra.mxu0 %v186
    %192 = vmatpush.msra.mxu0 %v185
    %193 = vmatpush.msra.mxu0 %v184
    %194 = vmatpush.msra.mxu0 %v183
    %195 = vmatpush.msra.mxu0 %v182
    %196 = vmatpush.msra.mxu0 %v181
    %197 = vmatpush.msra.mxu0 %v180
    %198 = vmatpush.msra.mxu0 %v179
    %199 = vmatpush.msra.mxu0 %v178
    %200 = vmatpush.msra.mxu0 %v177
    %201 = vmatpush.msra.mxu0 %v176
    %202 = vmatpush.msra.mxu0 %v175
    %203 = vmatpush.msra.mxu0 %v174
    %204 = vmatpush.msra.mxu0 %v173
    %205 = vmatpush.msra.mxu0 %v172
    %206 = vmatpush.msra.mxu0 %v171
    %207 = vmatmul.f32.gmra.mxu0 %v170
    %v208 = vpop.f32.mrf.mxu0
    %v209 = vadd.f32 %v189, %v208
    %210 = vdwg.mxu0
    %v211 = vlaneseq
    %v212 = vand.u32 %v211, 127
    %vm213 = vcmp.lt.s32.totalorder %v212, 8
    %vm214 = vcmp.eq.s32.totalorder %v212, 8
    %v215 = vsel %vm213, %v209, -inf
    %216 = vmax.xlane.f32.xlu0 %v215
    %v217 = vpop.xlane.xlu0 %216
    %v218 = vsub.f32 %v215, %v217
    %v219 = vmul.f32 %v218, 1.442695
    %v220 = vpow.pop %v219
    %221 = vadd.xlane.f32.xlu0 %v220
    %v222 = vpop.xlane.xlu0 %221
    %v223 = vrcp.pop %v222
    %v224 = vmul.f32 %v222, %v223
    %v225 = vsub.f32 2.0, %v224
    %v226 = vmul.f32 %v223, %v225
    %v227 = vmul.f32 %v220, %v226
    %v228 = vtanh.pop %v209
    %v229 = vsel %vm214, %v228, 0.0
    %v230 = vsel %vm213, %v227, %v229
    %231 = vst [vmem:[#allocation10] sm:$0xff] %v230
    // Predicated region
    $region46: #{tpu_custom_call.1} parent=1 // pred_check
      _
    $region47: #{tpu_custom_call.1} parent=1 // pred_check_branch
      %233 = sbr.rel (0) target = $region49
    $region48: #{tpu_custom_call.1} parent=1 // pred_region
      %235 = vsyncadd [#allocation4], 0
      %s237 = sshll.u32 [#allocation10], 4
      %s238 = int_to_ptr.vmem [resolvable:$true] %s237
      %s239 = sshll.u32 %s7, 4
      %s240 = int_to_ptr.hbm [resolvable:$true] %s239
      %242 = dma.vmem_to_hbm [thread:$0]  %s238, 128, %s240, [#allocation4]
    $region49: #{tpu_custom_call.1} parent=1 // pred_fallthru
      _
    // Predicated region
    $region50: #{tpu_custom_call.1} parent=1 // pred_check
      _
    $region51: #{tpu_custom_call.1} parent=1 // pred_check_branch
      %244 = sbr.rel (0) target = $region53
    $region52: #{tpu_custom_call.1} parent=1 // pred_region
      %246 = dma.done [#allocation4], 128
    $region53: #{tpu_custom_call.1} parent=1 // pred_fallthru
      _
    %247 = vsyncpa [#allocation3], 1
    %248 = vsyncpa [#allocation6], 1
    %249 = vsyncpa [#allocation9], 1
    %250 = vsyncpa [#allocation4], 1

</llo_original>
